<compile_context>
chip_gen: v5e
topology: v5e:2x2
jax: 0.10.0
libtpu: 0.0.40
codegen_flags: <defaults>
</compile_context>

<pallas_src>
import numpy as np
import jax
import jax.numpy as jnp
from jax.experimental import pallas as pl
from jax.experimental.pallas import tpu as pltpu


# -----------------------------------------------------------------------------
# host-side constant builders
# -----------------------------------------------------------------------------
def _interp_matrix(n_in, n_out):
    """1D linear-interpolation matrix for align_corners=True upsampling."""
    A = np.zeros((n_out, n_in), dtype=np.float32)
    if n_in == 1 or n_out == 1:
        A[:, 0] = 1.0
        return A
    scale = (n_in - 1) / (n_out - 1)
    for o in range(n_out):
        src = o * scale
        i0 = min(int(np.floor(src)), n_in - 1)
        i1 = min(i0 + 1, n_in - 1)
        f = src - i0
        A[o, i0] += 1.0 - f
        A[o, i1] += f
    return A


def _width_interp_pad(C1, W1, W2):
    """(C1*W1, C1*W2) per-channel width-interp (2x, align_corners) operator with
    the F.pad x offset / crop folded in (zero columns outside the pad extent)."""
    aw = _interp_matrix(W1, 2 * W1)                 # (2W1, W1)
    left = (W2 - 2 * W1) // 2                       # may be negative (crop)
    op = np.zeros((C1 * W1, C1 * W2), np.float32)
    for x in range(W2):
        xs = x - left
        if 0 <= xs < 2 * W1:
            for c in range(C1):
                op[c * W1:(c + 1) * W1, c * W2 + x] = aw[xs, :]
    return op


def _banded_weights(w_oihw, W):
    """Banded (block-Toeplitz) 3x3-conv weights, (3, Cin*W, Cout*W).

    WB[ky, ci*W + xin, co*W + j] = w[co, ci, ky, kx] with xin = j + kx - 1;
    out-of-range taps are omitted, which realises the x zero padding (so no pad
    columns are needed in the activation layout).
    """
    Cout, Cin = w_oihw.shape[0], w_oihw.shape[1]
    S = np.zeros((3, W, W), np.float32)
    for kx in range(3):
        for j in range(W):
            xi = j + kx - 1
            if 0 <= xi < W:
                S[kx, xi, j] = 1.0
    WB = jnp.einsum('ocgk,kxy->gcxoy', w_oihw.astype(jnp.float32),
                    jnp.asarray(S))
    return WB.reshape(3, Cin * W, Cout * W)


# -----------------------------------------------------------------------------
# fused Pallas kernel
# -----------------------------------------------------------------------------
def _make_kernel(C1, H1, W1, C2, H2, W2, Cmid, Cout, NB):
    Cin = C1 + C2
    Hp = H2 + 2                      # padded rows per image band
    M = NB * Hp                      # stacked band rows (matmul M)
    f32 = jnp.float32

    # static F.pad row geometry for the upsampled x1 (negative diff => crop)
    dy = H2 - 2 * H1
    top = dy // 2
    dst_y0, src_y0 = max(top, 0), max(-top, 0)
    copy_h = min(H2, top + 2 * H1) - dst_y0
    assert copy_h > 0, "upsampled x1 does not overlap x2 extent"

    def shifted_conv(src, wb_ref):
        # three MXU matmuls with M = NB*(H2+2); ky accumulation via shifted rows:
        #   out[b*Hp + y] = sum_ky g_ky[b*Hp + y + ky]
        g0 = jnp.dot(src, wb_ref[0], preferred_element_type=f32)
        g1 = jnp.dot(src, wb_ref[1], preferred_element_type=f32)
        g2 = jnp.dot(src, wb_ref[2], preferred_element_type=f32)
        return g0[0:M - 2] + g1[1:M - 1] + g2[2:M]

    def kernel(x1_ref, x2_ref, ah_ref, awp_ref,
               wb1_ref, s1_ref, b1_ref, wb2_ref, s2_ref, b2_ref,
               o_ref, xpad_ref, hpad_ref):
        zx = jnp.zeros((1, Cin * W2), f32)

        # -- 1) build the padded + concatenated conv-1 input band per image ----
        for b in range(NB):
            r0 = b * Hp
            # y-pad rows are never overwritten -> zero them each step (2 rows).
            xpad_ref[r0:r0 + 1, :] = zx
            xpad_ref[r0 + H2 + 1:r0 + H2 + 2, :] = zx
            # concat([x2, up(x1)]): x2 channels occupy lanes [0, C2*W2).
            xpad_ref[r0 + 1:r0 + 1 + H2, 0:C2 * W2] = x2_ref[b].astype(f32)
            # bilinear 2x upsample of x1 (channel-in-lane layout):
            #   rows:  (2H1, H1) @ (H1, C1*W1)                       [MXU]
            #   cols + F.pad x offset folded into awp: @ (C1*W1, C1*W2) [MXU]
            t = jnp.dot(ah_ref[...], x1_ref[b], preferred_element_type=f32)
            up = jnp.dot(t, awp_ref[...], preferred_element_type=f32)
            if dst_y0 > 0:                       # dy pad gap above (static skip)
                xpad_ref[r0 + 1:r0 + 1 + dst_y0, C2 * W2:Cin * W2] = (
                    jnp.zeros((dst_y0, C1 * W2), f32))
            if dst_y0 + copy_h < H2:             # dy pad gap below (static skip)
                rem = H2 - dst_y0 - copy_h
                xpad_ref[r0 + 1 + dst_y0 + copy_h:r0 + 1 + H2,
                         C2 * W2:Cin * W2] = jnp.zeros((rem, C1 * W2), f32)
            xpad_ref[r0 + 1 + dst_y0:r0 + 1 + dst_y0 + copy_h,
                     C2 * W2:Cin * W2] = up[src_y0:src_y0 + copy_h, :]

        # -- 2) conv1 -> folded BN (eval) -> ReLU, stored into conv-2 band -----
        h = shifted_conv(xpad_ref[...], wb1_ref)           # (M-2, Cmid*W2)
        h = jnp.maximum(h * s1_ref[...] + b1_ref[...], 0.0)
        hpad_ref[1:M - 1, :] = h                            # one bulk store
        zh1 = jnp.zeros((1, Cmid * W2), f32)
        hpad_ref[0:1, :] = zh1                              # first band top pad
        hpad_ref[M - 1:M, :] = zh1                          # last band bottom pad
        if NB > 1:                                          # cross-image junk rows
            zh2 = jnp.zeros((2, Cmid * W2), f32)
            for b in range(NB - 1):
                hpad_ref[b * Hp + H2 + 1:b * Hp + H2 + 3, :] = zh2

        # -- 3) conv2 -> folded BN -> ReLU, lane-dense output store ------------
        y = shifted_conv(hpad_ref[...], wb2_ref)            # (M-2, Cout*W2)
        y = jnp.maximum(y * s2_ref[...] + b2_ref[...], 0.0)
        for b in range(NB):
            o_ref[b] = y[b * Hp:b * Hp + H2, :].astype(o_ref.dtype)

    return kernel


# -----------------------------------------------------------------------------
# wrapper
# -----------------------------------------------------------------------------
def upsample_forward(x1, x2, w1, scale1, bias1, w2, scale2, bias2):
    """Upsample.forward.  x1, x2 NCHW; w1/w2 OIHW 3x3 (no bias); BN folded into
    per-channel scale/bias (inference mode).  Returns NCHW."""
    N, C1, H1, W1 = x1.shape
    N2, C2, H2, W2 = x2.shape
    assert N == N2
    Cmid, Cin = w1.shape[0], w1.shape[1]
    Cout = w2.shape[0]
    assert Cin == C1 + C2 and w2.shape[1] == Cmid
    f32 = jnp.float32
    Hp = H2 + 2

    # batch elements per grid step (fills MXU rows, amortizes per-step overhead)
    NB = 1
    for d in (8, 4, 2):
        if N % d == 0:
            NB = d
            break

    # host-side constants
    ah = jnp.asarray(_interp_matrix(H1, 2 * H1))          # (2H1, H1)
    awp = jnp.asarray(_width_interp_pad(C1, W1, W2))      # (C1*W1, C1*W2)
    wb1 = _banded_weights(w1, W2)                         # (3, Cin*W2,  Cmid*W2)
    wb2 = _banded_weights(w2, W2)                         # (3, Cmid*W2, Cout*W2)
    srow1 = jnp.repeat(scale1.astype(f32), W2)[None, :]   # (1, Cmid*W2)
    brow1 = jnp.repeat(bias1.astype(f32), W2)[None, :]
    srow2 = jnp.repeat(scale2.astype(f32), W2)[None, :]   # (1, Cout*W2)
    brow2 = jnp.repeat(bias2.astype(f32), W2)[None, :]

    # lane-dense channel-in-lane relayouts (XLA plumbing outside the kernel)
    x1_l = x1.transpose(0, 2, 1, 3).reshape(N, H1, C1 * W1)
    x2_l = x2.transpose(0, 2, 1, 3).reshape(N, H2, C2 * W2)

    kernel = _make_kernel(C1, H1, W1, C2, H2, W2, Cmid, Cout, NB)

    # generation-aware VMEM budget: exact (8,128)-tile-padded sum, weights
    # conservatively counted double-buffered (constant-index blocks), headroom
    # kept below physical per-TC VMEM.
    def rup(x, m):
        return (x + m - 1) // m * m

    def tb(shape):
        lead = int(np.prod(shape[:-2])) if len(shape) > 2 else 1
        return lead * rup(shape[-2], 8) * rup(shape[-1], 128) * 4

    blk = tb((NB, H1, C1 * W1)) + tb((NB, H2, C2 * W2)) + tb((NB, H2, Cout * W2))
    wgt = (tb(ah.shape) + tb(awp.shape) + tb(wb1.shape) + tb(wb2.shape)
           + 2 * tb(srow1.shape) + 2 * tb(srow2.shape))
    scr = tb((NB * Hp, Cin * W2)) + tb((NB * Hp, Cmid * W2))
    need = 2 * blk + 2 * wgt + scr
    try:
        phys = pltpu.get_tpu_info().vmem_capacity_bytes
    except Exception:
        phys = 64 << 20                                    # v7x per-TC size
    vmem_limit = int(min(max(phys - (8 << 20), 16 << 20),
                         max(2 * need, 16 << 20)))

    full2 = lambda n: (0, 0)
    full3 = lambda n: (0, 0, 0)
    out = pl.pallas_call(
        kernel,
        out_shape=jax.ShapeDtypeStruct((N, H2, Cout * W2), x1.dtype),
        grid=(N // NB,),
        in_specs=[
            pl.BlockSpec((NB, H1, C1 * W1), lambda n: (n, 0, 0)),
            pl.BlockSpec((NB, H2, C2 * W2), lambda n: (n, 0, 0)),
            pl.BlockSpec((2 * H1, H1), full2),
            pl.BlockSpec((C1 * W1, C1 * W2), full2),
            pl.BlockSpec((3, Cin * W2, Cmid * W2), full3),
            pl.BlockSpec((1, Cmid * W2), full2),
            pl.BlockSpec((1, Cmid * W2), full2),
            pl.BlockSpec((3, Cmid * W2, Cout * W2), full3),
            pl.BlockSpec((1, Cout * W2), full2),
            pl.BlockSpec((1, Cout * W2), full2),
        ],
        out_specs=pl.BlockSpec((NB, H2, Cout * W2), lambda n: (n, 0, 0)),
        scratch_shapes=[
            pltpu.VMEM((NB * Hp, Cin * W2), f32),    # stacked conv-1 input bands
            pltpu.VMEM((NB * Hp, Cmid * W2), f32),   # stacked conv-2 input bands
        ],
        compiler_params=pltpu.CompilerParams(
            dimension_semantics=("parallel",),
            vmem_limit_bytes=vmem_limit,
        ),
    )(x1_l, x2_l, ah, awp, wb1, srow1, brow1, wb2, srow2, brow2)

    # back to NCHW (layout plumbing outside the kernel)
    return out.reshape(N, H2, Cout, W2).transpose(0, 2, 1, 3)


# -----------------------------------------------------------------------------
# pure-JAX reference (for verification)
# -----------------------------------------------------------------------------
def _ref_forward(x1, x2, w1, s1, b1, w2, s2, b2):
    N, C1, H, W = x1.shape
    ah = jnp.asarray(_interp_matrix(H, 2 * H))
    aw = jnp.asarray(_interp_matrix(W, 2 * W))
    up = jnp.einsum('ph,nchw,qw->ncpq', ah, x1, aw,
                    precision=jax.lax.Precision.HIGHEST)
    diffY = x2.shape[2] - up.shape[2]
    diffX = x2.shape[3] - up.shape[3]
    up = jnp.pad(up, ((0, 0), (0, 0),
                      (diffY // 2, diffY - diffY // 2),
                      (diffX // 2, diffX - diffX // 2)))
    x = jnp.concatenate([x2, up], axis=1)

    def cbr(x, w, s, b):
        y = jax.lax.conv_general_dilated(
            x, w, (1, 1), ((1, 1), (1, 1)),
            dimension_numbers=('NCHW', 'OIHW', 'NCHW'),
            precision=jax.lax.Precision.HIGHEST)
        y = y * s[None, :, None, None] + b[None, :, None, None]
        return jnp.maximum(y, 0.0)

    return cbr(cbr(x, w1, s1, b1), w2, s2, b2)


# -----------------------------------------------------------------------------
if __name__ == "__main__":
    in_channels, out_channels = 8, 4
    mid_channels = in_channels // 2            # bilinear=True branch of Upsample
    N, H1, W1 = 2, 8, 8                        # x1 (decoder feature) spatial
    H2, W2 = 16, 16                            # x2 (skip connection) spatial
    c1 = in_channels // 2                      # x1 channels
    c2 = in_channels - c1                      # x2 channels (c1 + c2 == in_channels)

    keys = jax.random.split(jax.random.PRNGKey(0), 12)
    x1 = jax.random.normal(keys[0], (N, c1, H1, W1), jnp.float32)
    x2 = jax.random.normal(keys[1], (N, c2, H2, W2), jnp.float32)

    # Deterministic synthetic parameters (conv weights OIHW, BN params).
    w1 = 0.1 * jax.random.normal(keys[2], (mid_channels, in_channels, 3, 3), jnp.float32)
    g1 = 1.0 + 0.1 * jax.random.normal(keys[3], (mid_channels,), jnp.float32)
    be1 = 0.1 * jax.random.normal(keys[4], (mid_channels,), jnp.float32)
    m1 = 0.1 * jax.random.normal(keys[5], (mid_channels,), jnp.float32)
    v1 = jax.random.uniform(keys[6], (mid_channels,), jnp.float32, 0.5, 1.5)

    w2 = 0.1 * jax.random.normal(keys[7], (out_channels, mid_channels, 3, 3), jnp.float32)
    g2 = 1.0 + 0.1 * jax.random.normal(keys[8], (out_channels,), jnp.float32)
    be2 = 0.1 * jax.random.normal(keys[9], (out_channels,), jnp.float32)
    m2 = 0.1 * jax.random.normal(keys[10], (out_channels,), jnp.float32)
    v2 = jax.random.uniform(keys[11], (out_channels,), jnp.float32, 0.5, 1.5)

    eps = 1e-5
    scale1 = g1 / jnp.sqrt(v1 + eps)
    bias1 = be1 - m1 * scale1
    scale2 = g2 / jnp.sqrt(v2 + eps)
    bias2 = be2 - m2 * scale2

    out = upsample_forward(x1, x2, w1, scale1, bias1, w2, scale2, bias2)
    out = jax.block_until_ready(out)

    ref = jax.block_until_ready(
        _ref_forward(x1, x2, w1, scale1, bias1, w2, scale2, bias2))

    assert out.shape == (N, out_channels, H2, W2), out.shape
    max_err = float(jnp.max(jnp.abs(out - ref)))
    assert max_err < 2e-3, f"mismatch vs reference, max_err={max_err}"

    print("KERNEL_OK")
</pallas_src>

<mosaic_0001>
module attributes {stable_mosaic.version = 11 : i64} {
  func.func @kernel(%arg0: i32, %arg1: memref<2x8x32xf32, #tpu.memory_space<vmem>>, %arg2: memref<2x16x64xf32, #tpu.memory_space<vmem>>, %arg3: memref<16x8xf32, #tpu.memory_space<vmem>>, %arg4: memref<32x64xf32, #tpu.memory_space<vmem>>, %arg5: memref<3x128x64xf32, #tpu.memory_space<vmem>>, %arg6: memref<1x64xf32, #tpu.memory_space<vmem>>, %arg7: memref<1x64xf32, #tpu.memory_space<vmem>>, %arg8: memref<3x64x64xf32, #tpu.memory_space<vmem>>, %arg9: memref<1x64xf32, #tpu.memory_space<vmem>>, %arg10: memref<1x64xf32, #tpu.memory_space<vmem>>, %arg11: memref<2x16x64xf32, #tpu.memory_space<vmem>>, %arg12: memref<36x128xf32, #tpu.memory_space<vmem>>, %arg13: memref<36x64xf32, #tpu.memory_space<vmem>>) attributes {dimension_semantics = [#tpu.dimension_semantics<parallel>], iteration_bounds = array<i64: 1>, scalar_prefetch = 0 : i64, scratch_operands = 2 : i64, tpu.core_type = #tpu.core_type<tc>, window_params = [{transform_indices = @transform_0, window_bounds = array<i64: 2, 8, 32>}, {transform_indices = @transform_1, window_bounds = array<i64: 2, 16, 64>}, {pipeline_mode = #tpu.pipeline_mode<synchronous>, transform_indices = @transform_2, window_bounds = array<i64: 16, 8>}, {pipeline_mode = #tpu.pipeline_mode<synchronous>, transform_indices = @transform_3, window_bounds = array<i64: 32, 64>}, {pipeline_mode = #tpu.pipeline_mode<synchronous>, transform_indices = @transform_4, window_bounds = array<i64: 3, 128, 64>}, {pipeline_mode = #tpu.pipeline_mode<synchronous>, transform_indices = @transform_5, window_bounds = array<i64: 1, 64>}, {pipeline_mode = #tpu.pipeline_mode<synchronous>, transform_indices = @transform_6, window_bounds = array<i64: 1, 64>}, {pipeline_mode = #tpu.pipeline_mode<synchronous>, transform_indices = @transform_7, window_bounds = array<i64: 3, 64, 64>}, {pipeline_mode = #tpu.pipeline_mode<synchronous>, transform_indices = @transform_8, window_bounds = array<i64: 1, 64>}, {pipeline_mode = #tpu.pipeline_mode<synchronous>, transform_indices = @transform_9, window_bounds = array<i64: 1, 64>}, {transform_indices = @transform_10, window_bounds = array<i64: 2, 16, 64>}]} {
    %cst = arith.constant 0.000000e+00 : f32
    %0 = vector.broadcast %cst : f32 to vector<1x128xf32>
    %c0 = arith.constant 0 : index
    %c0_0 = arith.constant 0 : index
    %1 = vector.load %arg12[%c0, %c0_0] : memref<36x128xf32, #tpu.memory_space<vmem>>, vector<1x128xf32>
    tpu.vector_store %arg12[%c0, %c0_0], %0 {strides = array<i32>} : memref<36x128xf32, #tpu.memory_space<vmem>>, vector<1x128xf32>,
    %c17 = arith.constant 17 : index
    %c0_1 = arith.constant 0 : index
    %2 = vector.load %arg12[%c17, %c0_1] : memref<36x128xf32, #tpu.memory_space<vmem>>, vector<1x128xf32>
    tpu.vector_store %arg12[%c17, %c0_1], %0 {strides = array<i32>} : memref<36x128xf32, #tpu.memory_space<vmem>>, vector<1x128xf32>,
    %c0_2 = arith.constant 0 : index
    %c0_3 = arith.constant 0 : index
    %c0_4 = arith.constant 0 : index
    %3 = vector.load %arg2[%c0_2, %c0_3, %c0_4] : memref<2x16x64xf32, #tpu.memory_space<vmem>>, vector<1x16x64xf32>
    %4 = vector.shape_cast %3 : vector<1x16x64xf32> to vector<16x64xf32>
    %c1 = arith.constant 1 : index
    %c0_5 = arith.constant 0 : index
    %5 = vector.load %arg12[%c1, %c0_5] : memref<36x128xf32, #tpu.memory_space<vmem>>, vector<16x64xf32>
    tpu.vector_store %arg12[%c1, %c0_5], %4 {strides = array<i32>} : memref<36x128xf32, #tpu.memory_space<vmem>>, vector<16x64xf32>,
    %c0_6 = arith.constant 0 : index
    %c0_7 = arith.constant 0 : index
    %6 = vector.load %arg3[%c0_6, %c0_7] : memref<16x8xf32, #tpu.memory_space<vmem>>, vector<16x8xf32>
    %c0_8 = arith.constant 0 : index
    %c0_9 = arith.constant 0 : index
    %c0_10 = arith.constant 0 : index
    %7 = vector.load %arg1[%c0_8, %c0_9, %c0_10] : memref<2x8x32xf32, #tpu.memory_space<vmem>>, vector<1x8x32xf32>
    %8 = vector.shape_cast %7 : vector<1x8x32xf32> to vector<8x32xf32>
    %cst_11 = arith.constant dense<0.000000e+00> : vector<16x32xf32>
    %9 = tpu.matmul %6, %8, %cst_11 {dimension_numbers = #tpu.dot_dimension_numbers<[1], [0], [0], [1], [0, 0, 1, 1], [], []>} : vector<16x8xf32>, vector<8x32xf32>, vector<16x32xf32> -> vector<16x32xf32>
    %c0_12 = arith.constant 0 : index
    %c0_13 = arith.constant 0 : index
    %10 = vector.load %arg4[%c0_12, %c0_13] : memref<32x64xf32, #tpu.memory_space<vmem>>, vector<32x64xf32>
    %cst_14 = arith.constant dense<0.000000e+00> : vector<16x64xf32>
    %11 = tpu.matmul %9, %10, %cst_14 {dimension_numbers = #tpu.dot_dimension_numbers<[1], [0], [0], [1], [0, 0, 1, 1], [], []>} : vector<16x32xf32>, vector<32x64xf32>, vector<16x64xf32> -> vector<16x64xf32>
    %c1_15 = arith.constant 1 : index
    %c64 = arith.constant 64 : index
    %12 = vector.load %arg12[%c1_15, %c64] : memref<36x128xf32, #tpu.memory_space<vmem>>, vector<16x64xf32>
    tpu.vector_store %arg12[%c1_15, %c64], %11 {strides = array<i32>} : memref<36x128xf32, #tpu.memory_space<vmem>>, vector<16x64xf32>,
    %c18 = arith.constant 18 : index
    %c0_16 = arith.constant 0 : index
    %13 = vector.load %arg12[%c18, %c0_16] : memref<36x128xf32, #tpu.memory_space<vmem>>, vector<1x128xf32>
    tpu.vector_store %arg12[%c18, %c0_16], %0 {strides = array<i32>} : memref<36x128xf32, #tpu.memory_space<vmem>>, vector<1x128xf32>,
    %c35 = arith.constant 35 : index
    %c0_17 = arith.constant 0 : index
    %14 = vector.load %arg12[%c35, %c0_17] : memref<36x128xf32, #tpu.memory_space<vmem>>, vector<1x128xf32>
    tpu.vector_store %arg12[%c35, %c0_17], %0 {strides = array<i32>} : memref<36x128xf32, #tpu.memory_space<vmem>>, vector<1x128xf32>,
    %c1_18 = arith.constant 1 : index
    %c0_19 = arith.constant 0 : index
    %c0_20 = arith.constant 0 : index
    %15 = vector.load %arg2[%c1_18, %c0_19, %c0_20] : memref<2x16x64xf32, #tpu.memory_space<vmem>>, vector<1x16x64xf32>
    %16 = vector.shape_cast %15 : vector<1x16x64xf32> to vector<16x64xf32>
    %c19 = arith.constant 19 : index
    %c0_21 = arith.constant 0 : index
    %17 = vector.load %arg12[%c19, %c0_21] : memref<36x128xf32, #tpu.memory_space<vmem>>, vector<16x64xf32>
    tpu.vector_store %arg12[%c19, %c0_21], %16 {strides = array<i32>} : memref<36x128xf32, #tpu.memory_space<vmem>>, vector<16x64xf32>,
    %c0_22 = arith.constant 0 : index
    %c0_23 = arith.constant 0 : index
    %18 = vector.load %arg3[%c0_22, %c0_23] : memref<16x8xf32, #tpu.memory_space<vmem>>, vector<16x8xf32>
    %c1_24 = arith.constant 1 : index
    %c0_25 = arith.constant 0 : index
    %c0_26 = arith.constant 0 : index
    %19 = vector.load %arg1[%c1_24, %c0_25, %c0_26] : memref<2x8x32xf32, #tpu.memory_space<vmem>>, vector<1x8x32xf32>
    %20 = vector.shape_cast %19 : vector<1x8x32xf32> to vector<8x32xf32>
    %cst_27 = arith.constant dense<0.000000e+00> : vector<16x32xf32>
    %21 = tpu.matmul %18, %20, %cst_27 {dimension_numbers = #tpu.dot_dimension_numbers<[1], [0], [0], [1], [0, 0, 1, 1], [], []>} : vector<16x8xf32>, vector<8x32xf32>, vector<16x32xf32> -> vector<16x32xf32>
    %c0_28 = arith.constant 0 : index
    %c0_29 = arith.constant 0 : index
    %22 = vector.load %arg4[%c0_28, %c0_29] : memref<32x64xf32, #tpu.memory_space<vmem>>, vector<32x64xf32>
    %cst_30 = arith.constant dense<0.000000e+00> : vector<16x64xf32>
    %23 = tpu.matmul %21, %22, %cst_30 {dimension_numbers = #tpu.dot_dimension_numbers<[1], [0], [0], [1], [0, 0, 1, 1], [], []>} : vector<16x32xf32>, vector<32x64xf32>, vector<16x64xf32> -> vector<16x64xf32>
    %c19_31 = arith.constant 19 : index
    %c64_32 = arith.constant 64 : index
    %24 = vector.load %arg12[%c19_31, %c64_32] : memref<36x128xf32, #tpu.memory_space<vmem>>, vector<16x64xf32>
    tpu.vector_store %arg12[%c19_31, %c64_32], %23 {strides = array<i32>} : memref<36x128xf32, #tpu.memory_space<vmem>>, vector<16x64xf32>,
    %c0_33 = arith.constant 0 : index
    %c0_34 = arith.constant 0 : index
    %25 = vector.load %arg12[%c0_33, %c0_34] : memref<36x128xf32, #tpu.memory_space<vmem>>, vector<36x128xf32>
    %c0_35 = arith.constant 0 : index
    %c0_36 = arith.constant 0 : index
    %c0_37 = arith.constant 0 : index
    %26 = vector.load %arg5[%c0_35, %c0_36, %c0_37] : memref<3x128x64xf32, #tpu.memory_space<vmem>>, vector<1x128x64xf32>
    %27 = vector.shape_cast %26 : vector<1x128x64xf32> to vector<128x64xf32>
    %cst_38 = arith.constant dense<0.000000e+00> : vector<36x64xf32>
    %28 = tpu.matmul %25, %27, %cst_38 {dimension_numbers = #tpu.dot_dimension_numbers<[1], [0], [0], [1], [0, 0, 1, 1], [], []>} : vector<36x128xf32>, vector<128x64xf32>, vector<36x64xf32> -> vector<36x64xf32>
    %c1_39 = arith.constant 1 : index
    %c0_40 = arith.constant 0 : index
    %c0_41 = arith.constant 0 : index
    %29 = vector.load %arg5[%c1_39, %c0_40, %c0_41] : memref<3x128x64xf32, #tpu.memory_space<vmem>>, vector<1x128x64xf32>
    %30 = vector.shape_cast %29 : vector<1x128x64xf32> to vector<128x64xf32>
    %cst_42 = arith.constant dense<0.000000e+00> : vector<36x64xf32>
    %31 = tpu.matmul %25, %30, %cst_42 {dimension_numbers = #tpu.dot_dimension_numbers<[1], [0], [0], [1], [0, 0, 1, 1], [], []>} : vector<36x128xf32>, vector<128x64xf32>, vector<36x64xf32> -> vector<36x64xf32>
    %c2 = arith.constant 2 : index
    %c0_43 = arith.constant 0 : index
    %c0_44 = arith.constant 0 : index
    %32 = vector.load %arg5[%c2, %c0_43, %c0_44] : memref<3x128x64xf32, #tpu.memory_space<vmem>>, vector<1x128x64xf32>
    %33 = vector.shape_cast %32 : vector<1x128x64xf32> to vector<128x64xf32>
    %cst_45 = arith.constant dense<0.000000e+00> : vector<36x64xf32>
    %34 = tpu.matmul %25, %33, %cst_45 {dimension_numbers = #tpu.dot_dimension_numbers<[1], [0], [0], [1], [0, 0, 1, 1], [], []>} : vector<36x128xf32>, vector<128x64xf32>, vector<36x64xf32> -> vector<36x64xf32>
    %35 = vector.extract_strided_slice %28 {offsets = [0, 0], sizes = [34, 64], strides = [1, 1]} : vector<36x64xf32> to vector<34x64xf32>
    %36 = vector.extract_strided_slice %31 {offsets = [1, 0], sizes = [34, 64], strides = [1, 1]} : vector<36x64xf32> to vector<34x64xf32>
    %37 = arith.addf %35, %36 : vector<34x64xf32>
    %38 = vector.extract_strided_slice %34 {offsets = [2, 0], sizes = [34, 64], strides = [1, 1]} : vector<36x64xf32> to vector<34x64xf32>
    %39 = arith.addf %37, %38 : vector<34x64xf32>
    %c0_46 = arith.constant 0 : index
    %c0_47 = arith.constant 0 : index
    %40 = vector.load %arg6[%c0_46, %c0_47] : memref<1x64xf32, #tpu.memory_space<vmem>>, vector<1x64xf32>
    %41 = vector.broadcast %40 : vector<1x64xf32> to vector<34x64xf32>
    %42 = arith.mulf %39, %41 : vector<34x64xf32>
    %c0_48 = arith.constant 0 : index
    %c0_49 = arith.constant 0 : index
    %43 = vector.load %arg7[%c0_48, %c0_49] : memref<1x64xf32, #tpu.memory_space<vmem>>, vector<1x64xf32>
    %44 = vector.broadcast %43 : vector<1x64xf32> to vector<34x64xf32>
    %45 = arith.addf %42, %44 : vector<34x64xf32>
    %cst_50 = arith.constant 0.000000e+00 : f32
    %46 = vector.broadcast %cst_50 : f32 to vector<34x64xf32>
    %47 = arith.maximumf %45, %46 : vector<34x64xf32>
    %c1_51 = arith.constant 1 : index
    %c0_52 = arith.constant 0 : index
    %48 = vector.load %arg13[%c1_51, %c0_52] : memref<36x64xf32, #tpu.memory_space<vmem>>, vector<34x64xf32>
    tpu.vector_store %arg13[%c1_51, %c0_52], %47 {strides = array<i32>} : memref<36x64xf32, #tpu.memory_space<vmem>>, vector<34x64xf32>,
    %cst_53 = arith.constant 0.000000e+00 : f32
    %49 = vector.broadcast %cst_53 : f32 to vector<1x64xf32>
    %c0_54 = arith.constant 0 : index
    %c0_55 = arith.constant 0 : index
    %50 = vector.load %arg13[%c0_54, %c0_55] : memref<36x64xf32, #tpu.memory_space<vmem>>, vector<1x64xf32>
    tpu.vector_store %arg13[%c0_54, %c0_55], %49 {strides = array<i32>} : memref<36x64xf32, #tpu.memory_space<vmem>>, vector<1x64xf32>,
    %c35_56 = arith.constant 35 : index
    %c0_57 = arith.constant 0 : index
    %51 = vector.load %arg13[%c35_56, %c0_57] : memref<36x64xf32, #tpu.memory_space<vmem>>, vector<1x64xf32>
    tpu.vector_store %arg13[%c35_56, %c0_57], %49 {strides = array<i32>} : memref<36x64xf32, #tpu.memory_space<vmem>>, vector<1x64xf32>,
    %cst_58 = arith.constant 0.000000e+00 : f32
    %52 = vector.broadcast %cst_58 : f32 to vector<2x64xf32>
    %c17_59 = arith.constant 17 : index
    %c0_60 = arith.constant 0 : index
    %53 = vector.load %arg13[%c17_59, %c0_60] : memref<36x64xf32, #tpu.memory_space<vmem>>, vector<2x64xf32>
    tpu.vector_store %arg13[%c17_59, %c0_60], %52 {strides = array<i32>} : memref<36x64xf32, #tpu.memory_space<vmem>>, vector<2x64xf32>,
    %c0_61 = arith.constant 0 : index
    %c0_62 = arith.constant 0 : index
    %54 = vector.load %arg13[%c0_61, %c0_62] : memref<36x64xf32, #tpu.memory_space<vmem>>, vector<36x64xf32>
    %c0_63 = arith.constant 0 : index
    %c0_64 = arith.constant 0 : index
    %c0_65 = arith.constant 0 : index
    %55 = vector.load %arg8[%c0_63, %c0_64, %c0_65] : memref<3x64x64xf32, #tpu.memory_space<vmem>>, vector<1x64x64xf32>
    %56 = vector.shape_cast %55 : vector<1x64x64xf32> to vector<64x64xf32>
    %cst_66 = arith.constant dense<0.000000e+00> : vector<36x64xf32>
    %57 = tpu.matmul %54, %56, %cst_66 {dimension_numbers = #tpu.dot_dimension_numbers<[1], [0], [0], [1], [0, 0, 1, 1], [], []>} : vector<36x64xf32>, vector<64x64xf32>, vector<36x64xf32> -> vector<36x64xf32>
    %c1_67 = arith.constant 1 : index
    %c0_68 = arith.constant 0 : index
    %c0_69 = arith.constant 0 : index
    %58 = vector.load %arg8[%c1_67, %c0_68, %c0_69] : memref<3x64x64xf32, #tpu.memory_space<vmem>>, vector<1x64x64xf32>
    %59 = vector.shape_cast %58 : vector<1x64x64xf32> to vector<64x64xf32>
    %cst_70 = arith.constant dense<0.000000e+00> : vector<36x64xf32>
    %60 = tpu.matmul %54, %59, %cst_70 {dimension_numbers = #tpu.dot_dimension_numbers<[1], [0], [0], [1], [0, 0, 1, 1], [], []>} : vector<36x64xf32>, vector<64x64xf32>, vector<36x64xf32> -> vector<36x64xf32>
    %c2_71 = arith.constant 2 : index
    %c0_72 = arith.constant 0 : index
    %c0_73 = arith.constant 0 : index
    %61 = vector.load %arg8[%c2_71, %c0_72, %c0_73] : memref<3x64x64xf32, #tpu.memory_space<vmem>>, vector<1x64x64xf32>
    %62 = vector.shape_cast %61 : vector<1x64x64xf32> to vector<64x64xf32>
    %cst_74 = arith.constant dense<0.000000e+00> : vector<36x64xf32>
    %63 = tpu.matmul %54, %62, %cst_74 {dimension_numbers = #tpu.dot_dimension_numbers<[1], [0], [0], [1], [0, 0, 1, 1], [], []>} : vector<36x64xf32>, vector<64x64xf32>, vector<36x64xf32> -> vector<36x64xf32>
    %64 = vector.extract_strided_slice %57 {offsets = [0, 0], sizes = [34, 64], strides = [1, 1]} : vector<36x64xf32> to vector<34x64xf32>
    %65 = vector.extract_strided_slice %60 {offsets = [1, 0], sizes = [34, 64], strides = [1, 1]} : vector<36x64xf32> to vector<34x64xf32>
    %66 = arith.addf %64, %65 : vector<34x64xf32>
    %67 = vector.extract_strided_slice %63 {offsets = [2, 0], sizes = [34, 64], strides = [1, 1]} : vector<36x64xf32> to vector<34x64xf32>
    %68 = arith.addf %66, %67 : vector<34x64xf32>
    %c0_75 = arith.constant 0 : index
    %c0_76 = arith.constant 0 : index
    %69 = vector.load %arg9[%c0_75, %c0_76] : memref<1x64xf32, #tpu.memory_space<vmem>>, vector<1x64xf32>
    %70 = vector.broadcast %69 : vector<1x64xf32> to vector<34x64xf32>
    %71 = arith.mulf %68, %70 : vector<34x64xf32>
    %c0_77 = arith.constant 0 : index
    %c0_78 = arith.constant 0 : index
    %72 = vector.load %arg10[%c0_77, %c0_78] : memref<1x64xf32, #tpu.memory_space<vmem>>, vector<1x64xf32>
    %73 = vector.broadcast %72 : vector<1x64xf32> to vector<34x64xf32>
    %74 = arith.addf %71, %73 : vector<34x64xf32>
    %cst_79 = arith.constant 0.000000e+00 : f32
    %75 = vector.broadcast %cst_79 : f32 to vector<34x64xf32>
    %76 = arith.maximumf %74, %75 : vector<34x64xf32>
    %77 = vector.extract_strided_slice %76 {offsets = [0, 0], sizes = [16, 64], strides = [1, 1]} : vector<34x64xf32> to vector<16x64xf32>
    %c0_80 = arith.constant 0 : index
    %c0_81 = arith.constant 0 : index
    %c0_82 = arith.constant 0 : index
    %78 = vector.load %arg11[%c0_80, %c0_81, %c0_82] : memref<2x16x64xf32, #tpu.memory_space<vmem>>, vector<1x16x64xf32>
    %79 = vector.shape_cast %78 : vector<1x16x64xf32> to vector<16x64xf32>
    %80 = vector.shape_cast %77 : vector<16x64xf32> to vector<1x16x64xf32>
    tpu.vector_store %arg11[%c0_80, %c0_81, %c0_82], %80 {strides = array<i32>} : memref<2x16x64xf32, #tpu.memory_space<vmem>>, vector<1x16x64xf32>,
    %81 = vector.extract_strided_slice %76 {offsets = [18, 0], sizes = [16, 64], strides = [1, 1]} : vector<34x64xf32> to vector<16x64xf32>
    %c1_83 = arith.constant 1 : index
    %c0_84 = arith.constant 0 : index
    %c0_85 = arith.constant 0 : index
    %82 = vector.load %arg11[%c1_83, %c0_84, %c0_85] : memref<2x16x64xf32, #tpu.memory_space<vmem>>, vector<1x16x64xf32>
    %83 = vector.shape_cast %82 : vector<1x16x64xf32> to vector<16x64xf32>
    %84 = vector.shape_cast %81 : vector<16x64xf32> to vector<1x16x64xf32>
    tpu.vector_store %arg11[%c1_83, %c0_84, %c0_85], %84 {strides = array<i32>} : memref<2x16x64xf32, #tpu.memory_space<vmem>>, vector<1x16x64xf32>,
    return
  }
  func.func @transform_0(%arg0: i32) -> (i32, i32, i32) {
    %c0_i32 = arith.constant 0 : i32
    %c0_i32_0 = arith.constant 0 : i32
    %c0_i32_1 = arith.constant 0 : i32
    return %arg0, %c0_i32, %c0_i32_0 : i32, i32, i32
  }
  func.func @transform_1(%arg0: i32) -> (i32, i32, i32) {
    %c0_i32 = arith.constant 0 : i32
    %c0_i32_0 = arith.constant 0 : i32
    %c0_i32_1 = arith.constant 0 : i32
    return %arg0, %c0_i32, %c0_i32_0 : i32, i32, i32
  }
  func.func @transform_2(%arg0: i32) -> (i32, i32) {
    %c0_i32 = arith.constant 0 : i32
    %c0_i32_0 = arith.constant 0 : i32
    %c0_i32_1 = arith.constant 0 : i32
    return %c0_i32, %c0_i32_0 : i32, i32
  }
  func.func @transform_3(%arg0: i32) -> (i32, i32) {
    %c0_i32 = arith.constant 0 : i32
    %c0_i32_0 = arith.constant 0 : i32
    %c0_i32_1 = arith.constant 0 : i32
    return %c0_i32, %c0_i32_0 : i32, i32
  }
  func.func @transform_4(%arg0: i32) -> (i32, i32, i32) {
    %c0_i32 = arith.constant 0 : i32
    %c0_i32_0 = arith.constant 0 : i32
    %c0_i32_1 = arith.constant 0 : i32
    %c0_i32_2 = arith.constant 0 : i32
    return %c0_i32, %c0_i32_0, %c0_i32_1 : i32, i32, i32
  }
  func.func @transform_5(%arg0: i32) -> (i32, i32) {
    %c0_i32 = arith.constant 0 : i32
    %c0_i32_0 = arith.constant 0 : i32
    %c0_i32_1 = arith.constant 0 : i32
    return %c0_i32, %c0_i32_0 : i32, i32
  }
  func.func @transform_6(%arg0: i32) -> (i32, i32) {
    %c0_i32 = arith.constant 0 : i32
    %c0_i32_0 = arith.constant 0 : i32
    %c0_i32_1 = arith.constant 0 : i32
    return %c0_i32, %c0_i32_0 : i32, i32
  }
  func.func @transform_7(%arg0: i32) -> (i32, i32, i32) {
    %c0_i32 = arith.constant 0 : i32
    %c0_i32_0 = arith.constant 0 : i32
    %c0_i32_1 = arith.constant 0 : i32
    %c0_i32_2 = arith.constant 0 : i32
    return %c0_i32, %c0_i32_0, %c0_i32_1 : i32, i32, i32
  }
  func.func @transform_8(%arg0: i32) -> (i32, i32) {
    %c0_i32 = arith.constant 0 : i32
    %c0_i32_0 = arith.constant 0 : i32
    %c0_i32_1 = arith.constant 0 : i32
    return %c0_i32, %c0_i32_0 : i32, i32
  }
  func.func @transform_9(%arg0: i32) -> (i32, i32) {
    %c0_i32 = arith.constant 0 : i32
    %c0_i32_0 = arith.constant 0 : i32
    %c0_i32_1 = arith.constant 0 : i32
    return %c0_i32, %c0_i32_0 : i32, i32
  }
  func.func @transform_10(%arg0: i32) -> (i32, i32, i32) {
    %c0_i32 = arith.constant 0 : i32
    %c0_i32_0 = arith.constant 0 : i32
    %c0_i32_1 = arith.constant 0 : i32
    return %arg0, %c0_i32, %c0_i32_0 : i32, i32, i32
  }
}

</mosaic_0001>

<llo_original>
// kernel: tpu_custom_call.1
$region0: #{tpu_custom_call.1}
  #allocation0 [shape = 'u32[]', space=smem, size = 0x4, offset = 0x4, fixed_abs, tag = 'smem constant byte address 0x4 - core index']
  #allocation1 [shape = 'u32[72,128]{1,0:T(1,128)}', space=vmem, size = 0x9000, scoped, tag = 'internal scratch']
  #allocation2 [shape = 'f32[36,128]{1,0:T(8,128)}', space=vmem, size = 0x5000, scoped, tag = 'scratch operand']
  #allocation3 [shape = 'f32[36,64]{1,0:T(8,128)}', space=vmem, size = 0x5000, scoped, tag = 'scratch operand']
  %s0 = inlined_call_operand.vmem [shape: f32[2,8,32], index: 0, kind: input, shape index: {}]
  %s1 = inlined_call_operand.vmem [shape: f32[2,16,64], index: 1, kind: input, shape index: {}]
  %s2 = inlined_call_operand.vmem [shape: f32[16,8], index: 2, kind: input, shape index: {}]
  %s3 = inlined_call_operand.vmem [shape: f32[32,64], index: 3, kind: input, shape index: {}]
  %s4 = inlined_call_operand.vmem [shape: f32[3,128,64], index: 4, kind: input, shape index: {}]
  %s5 = inlined_call_operand.vmem [shape: f32[1,64], index: 5, kind: input, shape index: {}]
  %s6 = inlined_call_operand.vmem [shape: f32[1,64], index: 6, kind: input, shape index: {}]
  %s7 = inlined_call_operand.vmem [shape: f32[3,64,64], index: 7, kind: input, shape index: {}]
  %s8 = inlined_call_operand.vmem [shape: f32[1,64], index: 8, kind: input, shape index: {}]
  %s9 = inlined_call_operand.vmem [shape: f32[1,64], index: 9, kind: input, shape index: {}]
  %s10 = inlined_call_operand.hbm [shape: f32[2,16,64], index: 10, kind: output, shape index: {}]
  %s11 = sld [smem:[#allocation0]]
  $region50: #{tpu_custom_call.1} parent=0
    _
  %s13 = ssub.s32 1, %s11
  %s14 = scalar_select 0, %s13, %s11
  $region1: #{tpu_custom_call.1} parent=0
    #allocation4 [shape = 'u8[16384]{0}', space=vmem, size = 0x4000, scoped, tag = 'output window, operand 0, single buffered']
    #allocation5 [shape = 's32[1]{0}', space=sflag, size = 0x4, scoped, tag = 'scoped memory for tpu_custom_call.1']
    %15 = vsyncpa [#allocation5], 0
    // Predicated region
    $region2: #{tpu_custom_call.1} parent=1 // pred_check
      _
    $region3: #{tpu_custom_call.1} parent=1 // pred_check_branch
      %17 = sbr.rel (0) target = $region5
    $region4: #{tpu_custom_call.1} parent=1 // pred_region
      _
    $region5: #{tpu_custom_call.1} parent=1 // pred_fallthru
      _
    // Predicated region
    $region6: #{tpu_custom_call.1} parent=1 // pred_check
      _
    $region7: #{tpu_custom_call.1} parent=1 // pred_check_branch
      %19 = sbr.rel (0) target = $region9
    $region8: #{tpu_custom_call.1} parent=1 // pred_region
      _
    $region9: #{tpu_custom_call.1} parent=1 // pred_fallthru
      _
    // Predicated region
    $region10: #{tpu_custom_call.1} parent=1 // pred_check
      _
    $region11: #{tpu_custom_call.1} parent=1 // pred_check_branch
      %21 = sbr.rel (0) target = $region13
    $region12: #{tpu_custom_call.1} parent=1 // pred_region
      _
    $region13: #{tpu_custom_call.1} parent=1 // pred_fallthru
      _
    // Predicated region
    $region14: #{tpu_custom_call.1} parent=1 // pred_check
      _
    $region15: #{tpu_custom_call.1} parent=1 // pred_check_branch
      %23 = sbr.rel (0) target = $region17
    $region16: #{tpu_custom_call.1} parent=1 // pred_region
      _
    $region17: #{tpu_custom_call.1} parent=1 // pred_fallthru
      _
    // Predicated region
    $region18: #{tpu_custom_call.1} parent=1 // pred_check
      _
    $region19: #{tpu_custom_call.1} parent=1 // pred_check_branch
      %25 = sbr.rel (0) target = $region21
    $region20: #{tpu_custom_call.1} parent=1 // pred_region
      _
    $region21: #{tpu_custom_call.1} parent=1 // pred_fallthru
      _
    // Predicated region
    $region22: #{tpu_custom_call.1} parent=1 // pred_check
      _
    $region23: #{tpu_custom_call.1} parent=1 // pred_check_branch
      %27 = sbr.rel (0) target = $region25
    $region24: #{tpu_custom_call.1} parent=1 // pred_region
      _
    $region25: #{tpu_custom_call.1} parent=1 // pred_fallthru
      _
    // Predicated region
    $region26: #{tpu_custom_call.1} parent=1 // pred_check
      _
    $region27: #{tpu_custom_call.1} parent=1 // pred_check_branch
      %29 = sbr.rel (0) target = $region29
    $region28: #{tpu_custom_call.1} parent=1 // pred_region
      _
    $region29: #{tpu_custom_call.1} parent=1 // pred_fallthru
      _
    // Predicated region
    $region30: #{tpu_custom_call.1} parent=1 // pred_check
      _
    $region31: #{tpu_custom_call.1} parent=1 // pred_check_branch
      %31 = sbr.rel (0) target = $region33
    $region32: #{tpu_custom_call.1} parent=1 // pred_region
      _
    $region33: #{tpu_custom_call.1} parent=1 // pred_fallthru
      _
    // Predicated region
    $region34: #{tpu_custom_call.1} parent=1 // pred_check
      _
    $region35: #{tpu_custom_call.1} parent=1 // pred_check_branch
      %33 = sbr.rel (0) target = $region37
    $region36: #{tpu_custom_call.1} parent=1 // pred_region
      _
    $region37: #{tpu_custom_call.1} parent=1 // pred_fallthru
      _
    // Predicated region
    $region38: #{tpu_custom_call.1} parent=1 // pred_check
      _
    $region39: #{tpu_custom_call.1} parent=1 // pred_check_branch
      %35 = sbr.rel (0) target = $region41
    $region40: #{tpu_custom_call.1} parent=1 // pred_region
      _
    $region41: #{tpu_custom_call.1} parent=1 // pred_fallthru
      _
    %36 = vst [vmem:[#allocation2] sm:$0x1] 0.0
    %37 = vst [vmem:[#allocation2 + $0x11] sm:$0x1] 0.0
    %v38 = vld [vmem:[%s1] sm:$0xff]
    %v39 = vld [vmem:[%s1 + $0x8] sm:$0xff]
    %vm40 = vcmask 523264
    %41 = vst.msk [vmem:[#allocation2 + $0x1] sm:$0xff] %vm40, %v38
    %42 = vst.msk [vmem:[#allocation2 + $0x9] sm:$0xff] %vm40, %v39
    %v43 = vld [vmem:[%s2] sm:$0xff]
    %v44 = vld [vmem:[%s2 + $0x8] sm:$0xff]
    %v45 = vld [vmem:[%s0] sm:$0xff]
    %vm46 = vcmask 64512
    %v48 = vsel %vm46, %v43, 0
    %v51 = vsel %vm46, %v44, 0
    %53 = vmatpush.msra.mxu0 0.0
    %54 = vmatpush.msra.mxu0 0.0
    %55 = vmatpush.msra.mxu0 0.0
    %56 = vmatpush.msra.mxu0 0.0
    %57 = vmatpush.msra.mxu0 0.0
    %58 = vmatpush.msra.mxu0 0.0
    %59 = vmatpush.msra.mxu0 0.0
    %60 = vmatpush.msra.mxu0 0.0
    %61 = vmatpush.msra.mxu0 0.0
    %62 = vmatpush.msra.mxu0 0.0
    %63 = vmatpush.msra.mxu0 0.0
    %64 = vmatpush.msra.mxu0 0.0
    %65 = vmatpush.msra.mxu0 0.0
    %66 = vmatpush.msra.mxu0 0.0
    %67 = vmatpush.msra.mxu0 0.0
    %68 = vmatpush.msra.mxu0 %v45
    %69 = vmatmul.f32.gmra.mxu0 %v48
    %v70 = vpop.f32.mrf.mxu0
    %v71 = vadd.f32 0.0, %v70
    %72 = vmatmul.f32.gmra.mxu0 %v51
    %v73 = vpop.f32.mrf.mxu0
    %v74 = vadd.f32 0.0, %v73
    %75 = vdwg.mxu0
    %v76 = vld [vmem:[%s3] sm:$0xff]
    %v77 = vld [vmem:[%s3 + $0x8] sm:$0xff]
    %v78 = vld [vmem:[%s3 + $0x10] sm:$0xff]
    %v79 = vld [vmem:[%s3 + $0x18] sm:$0xff]
    %vm80 = vcmask 261120
    %v82 = vsel %vm80, %v71, 0
    %v85 = vsel %vm80, %v74, 0
    %87 = vmatpush.msra.mxu0 0.0
    %88 = vmatpush.msra.mxu0 0.0
    %89 = vmatpush.msra.mxu0 0.0
    %90 = vmatpush.msra.mxu0 0.0
    %91 = vmatpush.msra.mxu0 0.0
    %92 = vmatpush.msra.mxu0 0.0
    %93 = vmatpush.msra.mxu0 0.0
    %94 = vmatpush.msra.mxu0 0.0
    %95 = vmatpush.msra.mxu0 0.0
    %96 = vmatpush.msra.mxu0 0.0
    %97 = vmatpush.msra.mxu0 0.0
    %98 = vmatpush.msra.mxu0 0.0
    %99 = vmatpush.msra.mxu0 %v79
    %100 = vmatpush.msra.mxu0 %v78
    %101 = vmatpush.msra.mxu0 %v77
    %102 = vmatpush.msra.mxu0 %v76
    %103 = vmatmul.f32.gmra.mxu0 %v82
    %v104 = vpop.f32.mrf.mxu0
    %v105 = vadd.f32 0.0, %v104
    %106 = vmatmul.f32.gmra.mxu0 %v85
    %v107 = vpop.f32.mrf.mxu0
    %v108 = vadd.f32 0.0, %v107
    %109 = vdwg.mxu0
    %112 = vrot.lane.b32.xlu0 %v105, 64
    %v113 = vpop.permute.xlu0 %112
    %114 = vrot.lane.b32.xlu0 %v108, 64
    %v115 = vpop.permute.xlu0 %114
    %vm118 = vcmask 1048064
    %119 = vst.msk [vmem:[#allocation2 + $0x1] sm:$0xff] %vm118, %v113
    %120 = vst.msk [vmem:[#allocation2 + $0x9] sm:$0xff] %vm118, %v115
    %121 = vst [vmem:[#allocation2 + $0x12] sm:$0x1] 0.0
    %122 = vst [vmem:[#allocation2 + $0x23] sm:$0x1] 0.0
    %s123 = scalar_lea.vmem %s1, 16
    %v124 = vld [vmem:[%s123] sm:$0xff]
    %v125 = vld [vmem:[%s123 + $0x8] sm:$0xff]
    %126 = vst.msk [vmem:[#allocation2 + $0x13] sm:$0xff] %vm40, %v124
    %127 = vst.msk [vmem:[#allocation2 + $0x1b] sm:$0xff] %vm40, %v125
    %v128 = vld [vmem:[%s2] sm:$0xff]
    %v129 = vld [vmem:[%s2 + $0x8] sm:$0xff]
    %s130 = scalar_lea.vmem %s0, 8
    %v131 = vld [vmem:[%s130] sm:$0xff]
    %v133 = vsel %vm46, %v128, 0
    %v136 = vsel %vm46, %v129, 0
    %138 = vmatpush.msra.mxu0 0.0
    %139 = vmatpush.msra.mxu0 0.0
    %140 = vmatpush.msra.mxu0 0.0
    %141 = vmatpush.msra.mxu0 0.0
    %142 = vmatpush.msra.mxu0 0.0
    %143 = vmatpush.msra.mxu0 0.0
    %144 = vmatpush.msra.mxu0 0.0
    %145 = vmatpush.msra.mxu0 0.0
    %146 = vmatpush.msra.mxu0 0.0
    %147 = vmatpush.msra.mxu0 0.0
    %148 = vmatpush.msra.mxu0 0.0
    %149 = vmatpush.msra.mxu0 0.0
    %150 = vmatpush.msra.mxu0 0.0
    %151 = vmatpush.msra.mxu0 0.0
    %152 = vmatpush.msra.mxu0 0.0
    %153 = vmatpush.msra.mxu0 %v131
    %154 = vmatmul.f32.gmra.mxu0 %v133
    %v155 = vpop.f32.mrf.mxu0
    %v156 = vadd.f32 0.0, %v155
    %157 = vmatmul.f32.gmra.mxu0 %v136
    %v158 = vpop.f32.mrf.mxu0
    %v159 = vadd.f32 0.0, %v158
    %160 = vdwg.mxu0
    %v161 = vld [vmem:[%s3] sm:$0xff]
    %v162 = vld [vmem:[%s3 + $0x8] sm:$0xff]
    %v163 = vld [vmem:[%s3 + $0x10] sm:$0xff]
    %v164 = vld [vmem:[%s3 + $0x18] sm:$0xff]
    %v166 = vsel %vm80, %v156, 0
    %v169 = vsel %vm80, %v159, 0
    %171 = vmatpush.msra.mxu0 0.0
    %172 = vmatpush.msra.mxu0 0.0
    %173 = vmatpush.msra.mxu0 0.0
    %174 = vmatpush.msra.mxu0 0.0
    %175 = vmatpush.msra.mxu0 0.0
    %176 = vmatpush.msra.mxu0 0.0
    %177 = vmatpush.msra.mxu0 0.0
    %178 = vmatpush.msra.mxu0 0.0
    %179 = vmatpush.msra.mxu0 0.0
    %180 = vmatpush.msra.mxu0 0.0
    %181 = vmatpush.msra.mxu0 0.0
    %182 = vmatpush.msra.mxu0 0.0
    %183 = vmatpush.msra.mxu0 %v164
    %184 = vmatpush.msra.mxu0 %v163
    %185 = vmatpush.msra.mxu0 %v162
    %186 = vmatpush.msra.mxu0 %v161
    %187 = vmatmul.f32.gmra.mxu0 %v166
    %v188 = vpop.f32.mrf.mxu0
    %v189 = vadd.f32 0.0, %v188
    %190 = vmatmul.f32.gmra.mxu0 %v169
    %v191 = vpop.f32.mrf.mxu0
    %v192 = vadd.f32 0.0, %v191
    %193 = vdwg.mxu0
    %196 = vrot.lane.b32.xlu0 %v189, 64
    %v197 = vpop.permute.xlu0 %196
    %198 = vrot.lane.b32.xlu0 %v192, 64
    %v199 = vpop.permute.xlu0 %198
    %202 = vst.msk [vmem:[#allocation2 + $0x13] sm:$0xff] %vm118, %v197
    %203 = vst.msk [vmem:[#allocation2 + $0x1b] sm:$0xff] %vm118, %v199
    %v204 = vld [vmem:[#allocation2] sm:$0xff]
    %v205 = vld [vmem:[#allocation2 + $0x8] sm:$0xff]
    %v206 = vld [vmem:[#allocation2 + $0x10] sm:$0xff]
    %v207 = vld [vmem:[#allocation2 + $0x18] sm:$0xff]
    %v208 = vld [vmem:[#allocation2 + $0x20] sm:$0xf]
    %v209 = vld [vmem:[%s4] sm:$0xff]
    %v210 = vld [vmem:[%s4 + $0x8] sm:$0xff]
    %v211 = vld [vmem:[%s4 + $0x10] sm:$0xff]
    %v212 = vld [vmem:[%s4 + $0x18] sm:$0xff]
    %v213 = vld [vmem:[%s4 + $0x20] sm:$0xff]
    %v214 = vld [vmem:[%s4 + $0x28] sm:$0xff]
    %v215 = vld [vmem:[%s4 + $0x30] sm:$0xff]
    %v216 = vld [vmem:[%s4 + $0x38] sm:$0xff]
    %v217 = vld [vmem:[%s4 + $0x40] sm:$0xff]
    %v218 = vld [vmem:[%s4 + $0x48] sm:$0xff]
    %v219 = vld [vmem:[%s4 + $0x50] sm:$0xff]
    %v220 = vld [vmem:[%s4 + $0x58] sm:$0xff]
    %v221 = vld [vmem:[%s4 + $0x60] sm:$0xff]
    %v222 = vld [vmem:[%s4 + $0x68] sm:$0xff]
    %v223 = vld [vmem:[%s4 + $0x70] sm:$0xff]
    %v224 = vld [vmem:[%s4 + $0x78] sm:$0xff]
    %225 = vmatpush.msra.mxu0 %v224
    %226 = vmatpush.msra.mxu0 %v223
    %227 = vmatpush.msra.mxu0 %v222
    %228 = vmatpush.msra.mxu0 %v221
    %229 = vmatpush.msra.mxu0 %v220
    %230 = vmatpush.msra.mxu0 %v219
    %231 = vmatpush.msra.mxu0 %v218
    %232 = vmatpush.msra.mxu0 %v217
    %233 = vmatpush.msra.mxu0 %v216
    %234 = vmatpush.msra.mxu0 %v215
    %235 = vmatpush.msra.mxu0 %v214
    %236 = vmatpush.msra.mxu0 %v213
    %237 = vmatpush.msra.mxu0 %v212
    %238 = vmatpush.msra.mxu0 %v211
    %239 = vmatpush.msra.mxu0 %v210
    %240 = vmatpush.msra.mxu0 %v209
    %241 = vmatmul.f32.gmra.mxu0 %v204
    %v242 = vpop.f32.mrf.mxu0
    %v243 = vadd.f32 0.0, %v242
    %244 = vmatmul.f32.gmra.mxu0 %v205
    %v245 = vpop.f32.mrf.mxu0
    %v246 = vadd.f32 0.0, %v245
    %247 = vmatmul.f32.gmra.mxu0 %v206
    %v248 = vpop.f32.mrf.mxu0
    %v249 = vadd.f32 0.0, %v248
    %250 = vmatmul.f32.gmra.mxu0 %v207
    %v251 = vpop.f32.mrf.mxu0
    %v252 = vadd.f32 0.0, %v251
    %253 = vmatmul.f32.gmra.mxu0 %v208
    %v254 = vpop.f32.mrf.mxu0
    %v255 = vadd.f32 0.0, %v254
    %256 = vdwg.mxu0
    %s257 = scalar_lea.vmem %s4, 128
    %v258 = vld [vmem:[%s257] sm:$0xff]
    %v259 = vld [vmem:[%s257 + $0x8] sm:$0xff]
    %v260 = vld [vmem:[%s257 + $0x10] sm:$0xff]
    %v261 = vld [vmem:[%s257 + $0x18] sm:$0xff]
    %v262 = vld [vmem:[%s257 + $0x20] sm:$0xff]
    %v263 = vld [vmem:[%s257 + $0x28] sm:$0xff]
    %v264 = vld [vmem:[%s257 + $0x30] sm:$0xff]
    %v265 = vld [vmem:[%s257 + $0x38] sm:$0xff]
    %v266 = vld [vmem:[%s257 + $0x40] sm:$0xff]
    %v267 = vld [vmem:[%s257 + $0x48] sm:$0xff]
    %v268 = vld [vmem:[%s257 + $0x50] sm:$0xff]
    %v269 = vld [vmem:[%s257 + $0x58] sm:$0xff]
    %v270 = vld [vmem:[%s257 + $0x60] sm:$0xff]
    %v271 = vld [vmem:[%s257 + $0x68] sm:$0xff]
    %v272 = vld [vmem:[%s257 + $0x70] sm:$0xff]
    %v273 = vld [vmem:[%s257 + $0x78] sm:$0xff]
    %274 = vmatpush.msra.mxu0 %v273
    %275 = vmatpush.msra.mxu0 %v272
    %276 = vmatpush.msra.mxu0 %v271
    %277 = vmatpush.msra.mxu0 %v270
    %278 = vmatpush.msra.mxu0 %v269
    %279 = vmatpush.msra.mxu0 %v268
    %280 = vmatpush.msra.mxu0 %v267
    %281 = vmatpush.msra.mxu0 %v266
    %282 = vmatpush.msra.mxu0 %v265
    %283 = vmatpush.msra.mxu0 %v264
    %284 = vmatpush.msra.mxu0 %v263
    %285 = vmatpush.msra.mxu0 %v262
    %286 = vmatpush.msra.mxu0 %v261
    %287 = vmatpush.msra.mxu0 %v260
    %288 = vmatpush.msra.mxu0 %v259
    %289 = vmatpush.msra.mxu0 %v258
    %290 = vmatmul.f32.gmra.mxu0 %v204
    %v291 = vpop.f32.mrf.mxu0
    %v292 = vadd.f32 0.0, %v291
    %293 = vmatmul.f32.gmra.mxu0 %v205
    %v294 = vpop.f32.mrf.mxu0
    %v295 = vadd.f32 0.0, %v294
    %296 = vmatmul.f32.gmra.mxu0 %v206
    %v297 = vpop.f32.mrf.mxu0
    %v298 = vadd.f32 0.0, %v297
    %299 = vmatmul.f32.gmra.mxu0 %v207
    %v300 = vpop.f32.mrf.mxu0
    %v301 = vadd.f32 0.0, %v300
    %302 = vmatmul.f32.gmra.mxu0 %v208
    %v303 = vpop.f32.mrf.mxu0
    %v304 = vadd.f32 0.0, %v303
    %305 = vdwg.mxu0
    %s306 = scalar_lea.vmem %s4, 256
    %v307 = vld [vmem:[%s306] sm:$0xff]
    %v308 = vld [vmem:[%s306 + $0x8] sm:$0xff]
    %v309 = vld [vmem:[%s306 + $0x10] sm:$0xff]
    %v310 = vld [vmem:[%s306 + $0x18] sm:$0xff]
    %v311 = vld [vmem:[%s306 + $0x20] sm:$0xff]
    %v312 = vld [vmem:[%s306 + $0x28] sm:$0xff]
    %v313 = vld [vmem:[%s306 + $0x30] sm:$0xff]
    %v314 = vld [vmem:[%s306 + $0x38] sm:$0xff]
    %v315 = vld [vmem:[%s306 + $0x40] sm:$0xff]
    %v316 = vld [vmem:[%s306 + $0x48] sm:$0xff]
    %v317 = vld [vmem:[%s306 + $0x50] sm:$0xff]
    %v318 = vld [vmem:[%s306 + $0x58] sm:$0xff]
    %v319 = vld [vmem:[%s306 + $0x60] sm:$0xff]
    %v320 = vld [vmem:[%s306 + $0x68] sm:$0xff]
    %v321 = vld [vmem:[%s306 + $0x70] sm:$0xff]
    %v322 = vld [vmem:[%s306 + $0x78] sm:$0xff]
    %323 = vmatpush.msra.mxu0 %v322
    %324 = vmatpush.msra.mxu0 %v321
    %325 = vmatpush.msra.mxu0 %v320
    %326 = vmatpush.msra.mxu0 %v319
    %327 = vmatpush.msra.mxu0 %v318
    %328 = vmatpush.msra.mxu0 %v317
    %329 = vmatpush.msra.mxu0 %v316
    %330 = vmatpush.msra.mxu0 %v315
    %331 = vmatpush.msra.mxu0 %v314
    %332 = vmatpush.msra.mxu0 %v313
    %333 = vmatpush.msra.mxu0 %v312
    %334 = vmatpush.msra.mxu0 %v311
    %335 = vmatpush.msra.mxu0 %v310
    %336 = vmatpush.msra.mxu0 %v309
    %337 = vmatpush.msra.mxu0 %v308
    %338 = vmatpush.msra.mxu0 %v307
    %339 = vmatmul.f32.gmra.mxu0 %v204
    %v340 = vpop.f32.mrf.mxu0
    %v341 = vadd.f32 0.0, %v340
    %342 = vmatmul.f32.gmra.mxu0 %v205
    %v343 = vpop.f32.mrf.mxu0
    %v344 = vadd.f32 0.0, %v343
    %345 = vmatmul.f32.gmra.mxu0 %v206
    %v346 = vpop.f32.mrf.mxu0
    %v347 = vadd.f32 0.0, %v346
    %348 = vmatmul.f32.gmra.mxu0 %v207
    %v349 = vpop.f32.mrf.mxu0
    %v350 = vadd.f32 0.0, %v349
    %351 = vmatmul.f32.gmra.mxu0 %v208
    %v352 = vpop.f32.mrf.mxu0
    %v353 = vadd.f32 0.0, %v352
    %354 = vdwg.mxu0
    %vm360 = vcmask 1046528
    %v361 = vrot.slane %v292, 1
    %v362 = vrot.slane %v295, 1
    %v363 = vsel %vm360, %v361, %v362
    %v364 = vrot.slane %v298, 1
    %v365 = vsel %vm360, %v362, %v364
    %v366 = vrot.slane %v301, 1
    %v367 = vsel %vm360, %v364, %v366
    %v368 = vrot.slane %v304, 1
    %v369 = vsel %vm360, %v366, %v368
    %v375 = vadd.f32 %v243, %v363
    %v376 = vadd.f32 %v246, %v365
    %v377 = vadd.f32 %v249, %v367
    %v378 = vadd.f32 %v252, %v369
    %v379 = vadd.f32 %v255, %v368
    %vm385 = vcmask 1045504
    %v386 = vrot.slane %v341, 2
    %v387 = vrot.slane %v344, 2
    %v388 = vsel %vm385, %v386, %v387
    %v389 = vrot.slane %v347, 2
    %v390 = vsel %vm385, %v387, %v389
    %v391 = vrot.slane %v350, 2
    %v392 = vsel %vm385, %v389, %v391
    %v393 = vrot.slane %v353, 2
    %v394 = vsel %vm385, %v391, %v393
    %v400 = vadd.f32 %v375, %v388
    %v401 = vadd.f32 %v376, %v390
    %v402 = vadd.f32 %v377, %v392
    %v403 = vadd.f32 %v378, %v394
    %v404 = vadd.f32 %v379, %v393
    %v405 = vld [vmem:[%s5] sm:$0x1]
    %v407 = vperm.slane %v405, 0
    %v409 = vmul.f32 %v400, %v407
    %v410 = vmul.f32 %v401, %v407
    %v411 = vmul.f32 %v402, %v407
    %v412 = vmul.f32 %v403, %v407
    %v413 = vmul.f32 %v404, %v407
    %v414 = vld [vmem:[%s6] sm:$0x1]
    %v416 = vperm.slane %v414, 0
    %v418 = vadd.f32 %v409, %v416
    %v419 = vadd.f32 %v410, %v416
    %v420 = vadd.f32 %v411, %v416
    %v421 = vadd.f32 %v412, %v416
    %v422 = vadd.f32 %v413, %v416
    %v423 = vmax.f32 %v418, 0.0
    %v424 = vmax.f32 %v419, 0.0
    %v425 = vmax.f32 %v420, 0.0
    %v426 = vmax.f32 %v421, 0.0
    %v427 = vmax.f32 %v422, 0.0
    %428 = vst.msk [vmem:[#allocation3 + $0x1] sm:$0xff] %vm40, %v423
    %429 = vst.msk [vmem:[#allocation3 + $0x9] sm:$0xff] %vm40, %v424
    %430 = vst.msk [vmem:[#allocation3 + $0x11] sm:$0xff] %vm40, %v425
    %431 = vst.msk [vmem:[#allocation3 + $0x19] sm:$0xff] %vm40, %v426
    %vm432 = vcmask 517120
    %433 = vst.msk [vmem:[#allocation3 + $0x21] sm:$0x3] %vm432, %v427
    %vm434 = vcmask 516096
    %435 = vst.msk [vmem:[#allocation3] sm:$0x1] %vm434, 0.0
    %436 = vst.msk [vmem:[#allocation3 + $0x23] sm:$0x1] %vm434, 0.0
    %437 = vst.msk [vmem:[#allocation3 + $0x11] sm:$0x3] %vm432, 0.0
    %v438 = vld [vmem:[#allocation3] sm:$0xff]
    %v439 = vld [vmem:[#allocation3 + $0x8] sm:$0xff]
    %v440 = vld [vmem:[#allocation3 + $0x10] sm:$0xff]
    %v441 = vld [vmem:[#allocation3 + $0x18] sm:$0xff]
    %v442 = vld [vmem:[#allocation3 + $0x20] sm:$0xf]
    %v443 = vld [vmem:[%s7] sm:$0xff]
    %v444 = vld [vmem:[%s7 + $0x8] sm:$0xff]
    %v445 = vld [vmem:[%s7 + $0x10] sm:$0xff]
    %v446 = vld [vmem:[%s7 + $0x18] sm:$0xff]
    %v447 = vld [vmem:[%s7 + $0x20] sm:$0xff]
    %v448 = vld [vmem:[%s7 + $0x28] sm:$0xff]
    %v449 = vld [vmem:[%s7 + $0x30] sm:$0xff]
    %v450 = vld [vmem:[%s7 + $0x38] sm:$0xff]
    %v452 = vsel %vm40, %v438, 0
    %v455 = vsel %vm40, %v439, 0
    %v458 = vsel %vm40, %v440, 0
    %v461 = vsel %vm40, %v441, 0
    %v464 = vsel %vm40, %v442, 0
    %466 = vmatpush.msra.mxu0 0.0
    %467 = vmatpush.msra.mxu0 0.0
    %468 = vmatpush.msra.mxu0 0.0
    %469 = vmatpush.msra.mxu0 0.0
    %470 = vmatpush.msra.mxu0 0.0
    %471 = vmatpush.msra.mxu0 0.0
    %472 = vmatpush.msra.mxu0 0.0
    %473 = vmatpush.msra.mxu0 0.0
    %474 = vmatpush.msra.mxu0 %v450
    %475 = vmatpush.msra.mxu0 %v449
    %476 = vmatpush.msra.mxu0 %v448
    %477 = vmatpush.msra.mxu0 %v447
    %478 = vmatpush.msra.mxu0 %v446
    %479 = vmatpush.msra.mxu0 %v445
    %480 = vmatpush.msra.mxu0 %v444
    %481 = vmatpush.msra.mxu0 %v443
    %482 = vmatmul.f32.gmra.mxu0 %v452
    %v483 = vpop.f32.mrf.mxu0
    %v484 = vadd.f32 0.0, %v483
    %485 = vmatmul.f32.gmra.mxu0 %v455
    %v486 = vpop.f32.mrf.mxu0
    %v487 = vadd.f32 0.0, %v486
    %488 = vmatmul.f32.gmra.mxu0 %v458
    %v489 = vpop.f32.mrf.mxu0
    %v490 = vadd.f32 0.0, %v489
    %491 = vmatmul.f32.gmra.mxu0 %v461
    %v492 = vpop.f32.mrf.mxu0
    %v493 = vadd.f32 0.0, %v492
    %494 = vmatmul.f32.gmra.mxu0 %v464
    %v495 = vpop.f32.mrf.mxu0
    %v496 = vadd.f32 0.0, %v495
    %497 = vdwg.mxu0
    %s498 = scalar_lea.vmem %s7, 64
    %v499 = vld [vmem:[%s498] sm:$0xff]
    %v500 = vld [vmem:[%s498 + $0x8] sm:$0xff]
    %v501 = vld [vmem:[%s498 + $0x10] sm:$0xff]
    %v502 = vld [vmem:[%s498 + $0x18] sm:$0xff]
    %v503 = vld [vmem:[%s498 + $0x20] sm:$0xff]
    %v504 = vld [vmem:[%s498 + $0x28] sm:$0xff]
    %v505 = vld [vmem:[%s498 + $0x30] sm:$0xff]
    %v506 = vld [vmem:[%s498 + $0x38] sm:$0xff]
    %507 = vmatpush.msra.mxu0 0.0
    %508 = vmatpush.msra.mxu0 0.0
    %509 = vmatpush.msra.mxu0 0.0
    %510 = vmatpush.msra.mxu0 0.0
    %511 = vmatpush.msra.mxu0 0.0
    %512 = vmatpush.msra.mxu0 0.0
    %513 = vmatpush.msra.mxu0 0.0
    %514 = vmatpush.msra.mxu0 0.0
    %515 = vmatpush.msra.mxu0 %v506
    %516 = vmatpush.msra.mxu0 %v505
    %517 = vmatpush.msra.mxu0 %v504
    %518 = vmatpush.msra.mxu0 %v503
    %519 = vmatpush.msra.mxu0 %v502
    %520 = vmatpush.msra.mxu0 %v501
    %521 = vmatpush.msra.mxu0 %v500
    %522 = vmatpush.msra.mxu0 %v499
    %523 = vmatmul.f32.gmra.mxu0 %v452
    %v524 = vpop.f32.mrf.mxu0
    %v525 = vadd.f32 0.0, %v524
    %526 = vmatmul.f32.gmra.mxu0 %v455
    %v527 = vpop.f32.mrf.mxu0
    %v528 = vadd.f32 0.0, %v527
    %529 = vmatmul.f32.gmra.mxu0 %v458
    %v530 = vpop.f32.mrf.mxu0
    %v531 = vadd.f32 0.0, %v530
    %532 = vmatmul.f32.gmra.mxu0 %v461
    %v533 = vpop.f32.mrf.mxu0
    %v534 = vadd.f32 0.0, %v533
    %535 = vmatmul.f32.gmra.mxu0 %v464
    %v536 = vpop.f32.mrf.mxu0
    %v537 = vadd.f32 0.0, %v536
    %538 = vdwg.mxu0
    %s539 = scalar_lea.vmem %s7, 128
    %v540 = vld [vmem:[%s539] sm:$0xff]
    %v541 = vld [vmem:[%s539 + $0x8] sm:$0xff]
    %v542 = vld [vmem:[%s539 + $0x10] sm:$0xff]
    %v543 = vld [vmem:[%s539 + $0x18] sm:$0xff]
    %v544 = vld [vmem:[%s539 + $0x20] sm:$0xff]
    %v545 = vld [vmem:[%s539 + $0x28] sm:$0xff]
    %v546 = vld [vmem:[%s539 + $0x30] sm:$0xff]
    %v547 = vld [vmem:[%s539 + $0x38] sm:$0xff]
    %548 = vmatpush.msra.mxu0 0.0
    %549 = vmatpush.msra.mxu0 0.0
    %550 = vmatpush.msra.mxu0 0.0
    %551 = vmatpush.msra.mxu0 0.0
    %552 = vmatpush.msra.mxu0 0.0
    %553 = vmatpush.msra.mxu0 0.0
    %554 = vmatpush.msra.mxu0 0.0
    %555 = vmatpush.msra.mxu0 0.0
    %556 = vmatpush.msra.mxu0 %v547
    %557 = vmatpush.msra.mxu0 %v546
    %558 = vmatpush.msra.mxu0 %v545
    %559 = vmatpush.msra.mxu0 %v544
    %560 = vmatpush.msra.mxu0 %v543
    %561 = vmatpush.msra.mxu0 %v542
    %562 = vmatpush.msra.mxu0 %v541
    %563 = vmatpush.msra.mxu0 %v540
    %564 = vmatmul.f32.gmra.mxu0 %v452
    %v565 = vpop.f32.mrf.mxu0
    %v566 = vadd.f32 0.0, %v565
    %567 = vmatmul.f32.gmra.mxu0 %v455
    %v568 = vpop.f32.mrf.mxu0
    %v569 = vadd.f32 0.0, %v568
    %570 = vmatmul.f32.gmra.mxu0 %v458
    %v571 = vpop.f32.mrf.mxu0
    %v572 = vadd.f32 0.0, %v571
    %573 = vmatmul.f32.gmra.mxu0 %v461
    %v574 = vpop.f32.mrf.mxu0
    %v575 = vadd.f32 0.0, %v574
    %576 = vmatmul.f32.gmra.mxu0 %v464
    %v577 = vpop.f32.mrf.mxu0
    %v578 = vadd.f32 0.0, %v577
    %579 = vdwg.mxu0
    %v585 = vrot.slane %v525, 1
    %v586 = vrot.slane %v528, 1
    %v587 = vsel %vm360, %v585, %v586
    %v588 = vrot.slane %v531, 1
    %v589 = vsel %vm360, %v586, %v588
    %v590 = vrot.slane %v534, 1
    %v591 = vsel %vm360, %v588, %v590
    %v592 = vrot.slane %v537, 1
    %v593 = vsel %vm360, %v590, %v592
    %v599 = vadd.f32 %v484, %v587
    %v600 = vadd.f32 %v487, %v589
    %v601 = vadd.f32 %v490, %v591
    %v602 = vadd.f32 %v493, %v593
    %v603 = vadd.f32 %v496, %v592
    %v609 = vrot.slane %v566, 2
    %v610 = vrot.slane %v569, 2
    %v611 = vsel %vm385, %v609, %v610
    %v612 = vrot.slane %v572, 2
    %v613 = vsel %vm385, %v610, %v612
    %v614 = vrot.slane %v575, 2
    %v615 = vsel %vm385, %v612, %v614
    %v616 = vrot.slane %v578, 2
    %v617 = vsel %vm385, %v614, %v616
    %v623 = vadd.f32 %v599, %v611
    %v624 = vadd.f32 %v600, %v613
    %v625 = vadd.f32 %v601, %v615
    %v626 = vadd.f32 %v602, %v617
    %v627 = vadd.f32 %v603, %v616
    %v628 = vld [vmem:[%s8] sm:$0x1]
    %v630 = vperm.slane %v628, 0
    %v632 = vmul.f32 %v623, %v630
    %v633 = vmul.f32 %v624, %v630
    %v634 = vmul.f32 %v625, %v630
    %v635 = vmul.f32 %v626, %v630
    %v636 = vmul.f32 %v627, %v630
    %v637 = vld [vmem:[%s9] sm:$0x1]
    %v639 = vperm.slane %v637, 0
    %v641 = vadd.f32 %v632, %v639
    %v642 = vadd.f32 %v633, %v639
    %v643 = vadd.f32 %v634, %v639
    %v644 = vadd.f32 %v635, %v639
    %v645 = vadd.f32 %v636, %v639
    %v646 = vmax.f32 %v641, 0.0
    %v647 = vmax.f32 %v642, 0.0
    %v648 = vmax.f32 %v643, 0.0
    %v649 = vmax.f32 %v644, 0.0
    %v650 = vmax.f32 %v645, 0.0
    %651 = vst.msk [vmem:[#allocation4] sm:$0xff] %vm40, %v646
    %652 = vst.msk [vmem:[#allocation4 + $0x8] sm:$0xff] %vm40, %v647
    %s653 = scalar_lea.vmem [#allocation4], 16
    %vm654 = vcmask 523266
    %655 = vst.msk [vmem:[%s653 - $0x2] sm:$0xfc] %vm654, %v648
    %656 = vst.msk [vmem:[%s653 + $0x6] sm:$0xff] %vm40, %v649
    %657 = vst.msk [vmem:[%s653 + $0xe] sm:$0x3] %vm432, %v650
    // Predicated region
    $region42: #{tpu_custom_call.1} parent=1 // pred_check
      _
    $region43: #{tpu_custom_call.1} parent=1 // pred_check_branch
      %659 = sbr.rel (0) target = $region45
    $region44: #{tpu_custom_call.1} parent=1 // pred_region
      %661 = vsyncadd [#allocation5], 0
      %s662 = sshll.u32 [#allocation4], 4
      %s663 = int_to_ptr.vmem [resolvable:$true] %s662
      %s664 = sshll.u32 %s10, 4
      %s665 = int_to_ptr.hbm [resolvable:$true] %s664
      %670 = dma.vmem_to_hbm [thread:$0]  %s663, 512, %s665, [#allocation5], 128, 128, 8
    $region45: #{tpu_custom_call.1} parent=1 // pred_fallthru
      _
    // Predicated region
    $region46: #{tpu_custom_call.1} parent=1 // pred_check
      _
    $region47: #{tpu_custom_call.1} parent=1 // pred_check_branch
      %672 = sbr.rel (0) target = $region49
    $region48: #{tpu_custom_call.1} parent=1 // pred_region
      %674 = dma.done [#allocation5], 512
    $region49: #{tpu_custom_call.1} parent=1 // pred_fallthru
      _
    %675 = vsyncpa [#allocation5], 1

</llo_original>
